<compile_context>
chip_gen: v7x
topology: tpu7x:2x2x1
jax: 0.10.0
libtpu: 0.0.40
codegen_flags: <defaults>
</compile_context>

<pallas_src>
import jax
import jax.numpy as jnp
from jax.experimental import pallas as pl
from jax.experimental.pallas import tpu as pltpu


def _round_up(x, m):
    return ((x + m - 1) // m) * m


def _mlp_kernel(x_ref, w1_ref, b1_ref, w2_ref, b2_ref, w3_ref, b3_ref, o_ref):
    # Layer 1: bf16 MXU contraction, f32 accumulate.  Cast happens in-kernel (VPU, free
    # under DMA slack) so the wrapper never materializes a padded/cast copy of x.
    xb = x_ref[...].astype(jnp.bfloat16)
    h1 = jnp.dot(xb, w1_ref[...], preferred_element_type=jnp.float32)
    h1 = jnp.maximum(h1 + b1_ref[...], 0.0)                       # stays f32
    # Layer 2: tiny f32 matmul (128 -> 64), memory-bound kernel so this is free.
    h2 = jnp.dot(h1, w2_ref[...], preferred_element_type=jnp.float32)
    h2 = jnp.maximum(h2 + b2_ref[...], 0.0)
    # Layer 3: 64 -> d_out, written straight to the un-padded (TB, d_out) output block.
    out = jnp.dot(h2, w3_ref[...], preferred_element_type=jnp.float32)
    o_ref[...] = (out + b3_ref[...]).astype(o_ref.dtype)


def adjustment_regressor(x, params, *, tb=2048):
    """Fused forward pass of AdjustmentRegressor.

    x: (B, input_dim) float32
    params: dict with w1 (D_in,128), b1 (1,128), w2 (128,64), b2 (1,64),
            w3 (64,D_out), b3 (1,D_out) in (in, out) layout, float32.
    """
    B, d_in = x.shape
    d_out = params["w3"].shape[1]

    # Layer-1 operands.  Only pad the contraction dim when it is ragged; the padded rows of
    # w1 are zero and the padded lanes of x are zero, so the contraction is unchanged.
    if d_in % 128 == 0:
        d_in_p = d_in
        x_in = x
        w1 = params["w1"].astype(jnp.bfloat16)
    else:
        d_in_p = _round_up(d_in, 128)
        x_in = jnp.zeros((B, d_in_p), x.dtype).at[:, :d_in].set(x)
        w1 = jnp.zeros((d_in_p, 128), jnp.bfloat16).at[:d_in, :].set(
            params["w1"].astype(jnp.bfloat16))

    # Layers 2/3 stay f32 (tiny, VMEM-resident) for parity with the f32 reference.
    b1 = params["b1"].astype(jnp.float32)          # (1, 128)
    w2 = params["w2"].astype(jnp.float32)          # (128, 64)
    b2 = params["b2"].astype(jnp.float32)          # (1, 64)
    w3 = params["w3"].astype(jnp.float32)          # (64, d_out)
    b3 = params["b3"].astype(jnp.float32)          # (1, d_out)

    # Batch tile: big enough to hide per-step overhead, rounded to the bf16 sublane tile (16),
    # never larger than (the rounded-up) batch.  No batch zero-pad: cdiv grid + edge masking.
    TB = _round_up(min(tb, _round_up(B, 16)), 16)
    n_steps = pl.cdiv(B, TB)
    grid = (n_steps,)

    def resident(a):
        # Constant index_map -> block stays VMEM-resident across all grid steps.
        return pl.BlockSpec(a.shape, lambda i, _n=a.ndim: (0,) * _n)

    rows = n_steps * TB
    flops = 2 * rows * (d_in_p * 128 + 128 * 64 + 64 * d_out)
    bytes_accessed = (
        rows * d_in_p * 4 + rows * d_out * 4          # streamed x read + out write
        + w1.size * 2
        + (w2.size + w3.size + b1.size + b2.size + b3.size) * 4
    )

    return pl.pallas_call(
        _mlp_kernel,
        out_shape=jax.ShapeDtypeStruct((B, d_out), jnp.float32),
        grid_spec=pltpu.PrefetchScalarGridSpec(
            num_scalar_prefetch=0,
            grid=grid,
            in_specs=[
                pl.BlockSpec((TB, d_in_p), lambda i: (i, 0)),   # streamed x tile (f32)
                resident(w1),
                resident(b1),
                resident(w2),
                resident(b2),
                resident(w3),
                resident(b3),
            ],
            # Full-extent last dim: writes exactly (B, d_out), no padded slab + slice-back pass.
            out_specs=pl.BlockSpec((TB, d_out), lambda i: (i, 0)),
        ),
        compiler_params=pltpu.CompilerParams(
            dimension_semantics=("parallel",),
        ),
        cost_estimate=pl.CostEstimate(
            flops=flops, transcendentals=0, bytes_accessed=bytes_accessed),
    )(x_in, w1, b1, w2, b2, w3, b3)


def init_params(key, input_dim, output_dim):
    """Deterministic synthetic params. PyTorch Linear stores (out, in);
    we build (out, in) then transpose to (in, out) for the kernel."""
    ks = jax.random.split(key, 6)

    def linear(kw, kb, fan_in, fan_out):
        bound = 1.0 / jnp.sqrt(fan_in)
        w = jax.random.uniform(kw, (fan_out, fan_in), jnp.float32, -bound, bound)
        b = jax.random.uniform(kb, (fan_out,), jnp.float32, -bound, bound)
        return w.T, b.reshape(1, fan_out)   # (in, out), (1, out)

    w1, b1 = linear(ks[0], ks[1], input_dim, 128)
    w2, b2 = linear(ks[2], ks[3], 128, 64)
    w3, b3 = linear(ks[4], ks[5], 64, output_dim)
    return {"w1": w1, "b1": b1, "w2": w2, "b2": b2, "w3": w3, "b3": b3}


def _ref_mixed(x, params):
    """Reference mimicking the kernel's precision: bf16 layer-1 MXU dot, f32 elsewhere."""
    h1 = jnp.dot(x.astype(jnp.bfloat16), params["w1"].astype(jnp.bfloat16),
                 preferred_element_type=jnp.float32)
    h1 = jnp.maximum(h1 + params["b1"], 0.0)
    h2 = jnp.maximum(
        jnp.dot(h1, params["w2"], preferred_element_type=jnp.float32) + params["b2"], 0.0)
    return jnp.dot(h2, params["w3"], preferred_element_type=jnp.float32) + params["b3"]


def _ref_f32(x, params):
    h = jnp.maximum(x @ params["w1"] + params["b1"], 0.0)
    h = jnp.maximum(h @ params["w2"] + params["b2"], 0.0)
    return h @ params["w3"] + params["b3"]


if __name__ == "__main__":
    key = jax.random.PRNGKey(0)
    k_x, k_p, k_x2, k_p2 = jax.random.split(key, 4)

    # Small, "nice" shapes.
    batch, input_dim, output_dim = 8, 32, 8
    x = jax.random.normal(k_x, (batch, input_dim), jnp.float32)
    params = init_params(k_p, input_dim, output_dim)

    out = adjustment_regressor(x, params)
    jax.block_until_ready(out)
    assert out.shape == (batch, output_dim)
    assert jnp.allclose(out, _ref_mixed(x, params), atol=1e-2, rtol=1e-2)
    assert jnp.allclose(out, _ref_f32(x, params), atol=5e-2, rtol=5e-2)

    # Awkward shapes: ragged batch (cdiv grid + edge masking), ragged d_in (tail pad),
    # ragged d_out (narrow full-extent output block).
    batch2, in2, out2 = 37, 20, 5
    x2 = jax.random.normal(k_x2, (batch2, in2), jnp.float32)
    params2 = init_params(k_p2, in2, out2)
    o2 = adjustment_regressor(x2, params2)
    jax.block_until_ready(o2)
    assert o2.shape == (batch2, out2)
    assert jnp.allclose(o2, _ref_mixed(x2, params2), atol=1e-2, rtol=1e-2)
    assert jnp.allclose(o2, _ref_f32(x2, params2), atol=5e-2, rtol=5e-2)

    print("KERNEL_OK")
</pallas_src>

<mosaic_0001>
module attributes {stable_mosaic.version = 11 : i64} {
  func.func @_mlp_kernel(%arg0: i32, %arg1: memref<16x128xf32, #tpu.memory_space<vmem>>, %arg2: memref<128x128xbf16, #tpu.memory_space<vmem>>, %arg3: memref<1x128xf32, #tpu.memory_space<vmem>>, %arg4: memref<128x64xf32, #tpu.memory_space<vmem>>, %arg5: memref<1x64xf32, #tpu.memory_space<vmem>>, %arg6: memref<64x8xf32, #tpu.memory_space<vmem>>, %arg7: memref<1x8xf32, #tpu.memory_space<vmem>>, %arg8: memref<16x8xf32, #tpu.memory_space<vmem>>) attributes {dimension_semantics = [#tpu.dimension_semantics<parallel>], iteration_bounds = array<i64: 1>, scalar_prefetch = 0 : i64, scratch_operands = 0 : i64, tpu.core_type = #tpu.core_type<tc>, window_params = [{transform_indices = @transform_0, window_bounds = array<i64: 16, 128>}, {pipeline_mode = #tpu.pipeline_mode<synchronous>, transform_indices = @transform_1, window_bounds = array<i64: 128, 128>}, {pipeline_mode = #tpu.pipeline_mode<synchronous>, transform_indices = @transform_2, window_bounds = array<i64: 1, 128>}, {pipeline_mode = #tpu.pipeline_mode<synchronous>, transform_indices = @transform_3, window_bounds = array<i64: 128, 64>}, {pipeline_mode = #tpu.pipeline_mode<synchronous>, transform_indices = @transform_4, window_bounds = array<i64: 1, 64>}, {pipeline_mode = #tpu.pipeline_mode<synchronous>, transform_indices = @transform_5, window_bounds = array<i64: 64, 8>}, {pipeline_mode = #tpu.pipeline_mode<synchronous>, transform_indices = @transform_6, window_bounds = array<i64: 1, 8>}, {transform_indices = @transform_7, window_bounds = array<i64: 16, 8>}]} {
    %c0 = arith.constant 0 : index
    %c0_0 = arith.constant 0 : index
    %0 = vector.load %arg1[%c0, %c0_0] : memref<16x128xf32, #tpu.memory_space<vmem>>, vector<16x128xf32>
    %1 = arith.truncf %0 : vector<16x128xf32> to vector<16x128xbf16>
    %c0_1 = arith.constant 0 : index
    %c0_2 = arith.constant 0 : index
    %2 = vector.load %arg2[%c0_1, %c0_2] : memref<128x128xbf16, #tpu.memory_space<vmem>>, vector<128x128xbf16>
    %cst = arith.constant dense<0.000000e+00> : vector<16x128xf32>
    %3 = tpu.matmul %1, %2, %cst {dimension_numbers = #tpu.dot_dimension_numbers<[1], [0], [0], [1], [0, 0, 1, 1], [], []>} : vector<16x128xbf16>, vector<128x128xbf16>, vector<16x128xf32> -> vector<16x128xf32>
    %c0_3 = arith.constant 0 : index
    %c0_4 = arith.constant 0 : index
    %4 = vector.load %arg3[%c0_3, %c0_4] : memref<1x128xf32, #tpu.memory_space<vmem>>, vector<1x128xf32>
    %5 = vector.broadcast %4 : vector<1x128xf32> to vector<16x128xf32>
    %6 = arith.addf %3, %5 : vector<16x128xf32>
    %cst_5 = arith.constant 0.000000e+00 : f32
    %7 = vector.broadcast %cst_5 : f32 to vector<16x128xf32>
    %8 = arith.maximumf %6, %7 : vector<16x128xf32>
    %c0_6 = arith.constant 0 : index
    %c0_7 = arith.constant 0 : index
    %9 = vector.load %arg4[%c0_6, %c0_7] : memref<128x64xf32, #tpu.memory_space<vmem>>, vector<128x64xf32>
    %cst_8 = arith.constant dense<0.000000e+00> : vector<16x64xf32>
    %10 = tpu.matmul %8, %9, %cst_8 {dimension_numbers = #tpu.dot_dimension_numbers<[1], [0], [0], [1], [0, 0, 1, 1], [], []>} : vector<16x128xf32>, vector<128x64xf32>, vector<16x64xf32> -> vector<16x64xf32>
    %c0_9 = arith.constant 0 : index
    %c0_10 = arith.constant 0 : index
    %11 = vector.load %arg5[%c0_9, %c0_10] : memref<1x64xf32, #tpu.memory_space<vmem>>, vector<1x64xf32>
    %12 = vector.broadcast %11 : vector<1x64xf32> to vector<16x64xf32>
    %13 = arith.addf %10, %12 : vector<16x64xf32>
    %cst_11 = arith.constant 0.000000e+00 : f32
    %14 = vector.broadcast %cst_11 : f32 to vector<16x64xf32>
    %15 = arith.maximumf %13, %14 : vector<16x64xf32>
    %c0_12 = arith.constant 0 : index
    %c0_13 = arith.constant 0 : index
    %16 = vector.load %arg6[%c0_12, %c0_13] : memref<64x8xf32, #tpu.memory_space<vmem>>, vector<64x8xf32>
    %cst_14 = arith.constant dense<0.000000e+00> : vector<16x8xf32>
    %17 = tpu.matmul %15, %16, %cst_14 {dimension_numbers = #tpu.dot_dimension_numbers<[1], [0], [0], [1], [0, 0, 1, 1], [], []>} : vector<16x64xf32>, vector<64x8xf32>, vector<16x8xf32> -> vector<16x8xf32>
    %c0_15 = arith.constant 0 : index
    %c0_16 = arith.constant 0 : index
    %18 = vector.load %arg7[%c0_15, %c0_16] : memref<1x8xf32, #tpu.memory_space<vmem>>, vector<1x8xf32>
    %19 = vector.broadcast %18 : vector<1x8xf32> to vector<16x8xf32>
    %20 = arith.addf %17, %19 : vector<16x8xf32>
    %c0_17 = arith.constant 0 : index
    %c0_18 = arith.constant 0 : index
    %21 = vector.load %arg8[%c0_17, %c0_18] : memref<16x8xf32, #tpu.memory_space<vmem>>, vector<16x8xf32>
    tpu.vector_store %arg8[%c0_17, %c0_18], %20 {strides = array<i32>} : memref<16x8xf32, #tpu.memory_space<vmem>>, vector<16x8xf32>,
    return
  }
  func.func @transform_0(%arg0: i32) -> (i32, i32) {
    %c0_i32 = arith.constant 0 : i32
    %c0_i32_0 = arith.constant 0 : i32
    return %arg0, %c0_i32 : i32, i32
  }
  func.func @transform_1(%arg0: i32) -> (i32, i32) {
    %c0_i32 = arith.constant 0 : i32
    %c0_i32_0 = arith.constant 0 : i32
    %c0_i32_1 = arith.constant 0 : i32
    return %c0_i32, %c0_i32_0 : i32, i32
  }
  func.func @transform_2(%arg0: i32) -> (i32, i32) {
    %c0_i32 = arith.constant 0 : i32
    %c0_i32_0 = arith.constant 0 : i32
    %c0_i32_1 = arith.constant 0 : i32
    return %c0_i32, %c0_i32_0 : i32, i32
  }
  func.func @transform_3(%arg0: i32) -> (i32, i32) {
    %c0_i32 = arith.constant 0 : i32
    %c0_i32_0 = arith.constant 0 : i32
    %c0_i32_1 = arith.constant 0 : i32
    return %c0_i32, %c0_i32_0 : i32, i32
  }
  func.func @transform_4(%arg0: i32) -> (i32, i32) {
    %c0_i32 = arith.constant 0 : i32
    %c0_i32_0 = arith.constant 0 : i32
    %c0_i32_1 = arith.constant 0 : i32
    return %c0_i32, %c0_i32_0 : i32, i32
  }
  func.func @transform_5(%arg0: i32) -> (i32, i32) {
    %c0_i32 = arith.constant 0 : i32
    %c0_i32_0 = arith.constant 0 : i32
    %c0_i32_1 = arith.constant 0 : i32
    return %c0_i32, %c0_i32_0 : i32, i32
  }
  func.func @transform_6(%arg0: i32) -> (i32, i32) {
    %c0_i32 = arith.constant 0 : i32
    %c0_i32_0 = arith.constant 0 : i32
    %c0_i32_1 = arith.constant 0 : i32
    return %c0_i32, %c0_i32_0 : i32, i32
  }
  func.func @transform_7(%arg0: i32) -> (i32, i32) {
    %c0_i32 = arith.constant 0 : i32
    %c0_i32_0 = arith.constant 0 : i32
    return %arg0, %c0_i32 : i32, i32
  }
}

</mosaic_0001>

<llo_original>
// kernel: tpu_custom_call.1
$region0: #{tpu_custom_call.1}
  #allocation0 [shape = 'u32[]', space=smem, size = 0x4, offset = 0x4, fixed_abs, tag = 'smem constant byte address 0x4 - core index']
  #allocation1 [shape = 'u32[144,128]{1,0:T(1,128)}', space=vmem, size = 0x12000, scoped, tag = 'internal scratch']
  %s0 = inlined_call_operand.vmem [shape: f32[8,128], index: 0, kind: input, shape index: {}]
  %s1 = inlined_call_operand.vmem [shape: bf16[128,128], index: 1, kind: input, shape index: {}]
  %s2 = inlined_call_operand.vmem [shape: f32[1,128], index: 2, kind: input, shape index: {}]
  %s3 = inlined_call_operand.vmem [shape: f32[128,64], index: 3, kind: input, shape index: {}]
  %s4 = inlined_call_operand.vmem [shape: f32[1,64], index: 4, kind: input, shape index: {}]
  %s5 = inlined_call_operand.vmem [shape: f32[64,8], index: 5, kind: input, shape index: {}]
  %s6 = inlined_call_operand.vmem [shape: f32[1,8], index: 6, kind: input, shape index: {}]
  %s7 = inlined_call_operand.hbm [shape: f32[8,8], index: 7, kind: output, shape index: {}]
  %s8 = sld [smem:[#allocation0]]
  $region38: #{tpu_custom_call.1} parent=0
    _
  %s10 = ssub.s32 1, %s8
  %s11 = scalar_select 0, %s10, %s8
  $region1: #{tpu_custom_call.1} parent=0
    #allocation2 [shape = 'u8[8192]{0}', space=vmem, size = 0x2000, scoped, tag = 'output window, operand 0, single buffered']
    #allocation3 [shape = 's32[1]{0}', space=sflag, size = 0x4, scoped, tag = 'scoped memory for tpu_custom_call.1']
    %12 = vsyncpa [#allocation3], 0
    // Predicated region
    $region2: #{tpu_custom_call.1} parent=1 // pred_check
      _
    $region3: #{tpu_custom_call.1} parent=1 // pred_check_branch
      %14 = sbr.rel (0) target = $region5
    $region4: #{tpu_custom_call.1} parent=1 // pred_region
      _
    $region5: #{tpu_custom_call.1} parent=1 // pred_fallthru
      _
    // Predicated region
    $region6: #{tpu_custom_call.1} parent=1 // pred_check
      _
    $region7: #{tpu_custom_call.1} parent=1 // pred_check_branch
      %16 = sbr.rel (0) target = $region9
    $region8: #{tpu_custom_call.1} parent=1 // pred_region
      _
    $region9: #{tpu_custom_call.1} parent=1 // pred_fallthru
      _
    // Predicated region
    $region10: #{tpu_custom_call.1} parent=1 // pred_check
      _
    $region11: #{tpu_custom_call.1} parent=1 // pred_check_branch
      %18 = sbr.rel (0) target = $region13
    $region12: #{tpu_custom_call.1} parent=1 // pred_region
      _
    $region13: #{tpu_custom_call.1} parent=1 // pred_fallthru
      _
    // Predicated region
    $region14: #{tpu_custom_call.1} parent=1 // pred_check
      _
    $region15: #{tpu_custom_call.1} parent=1 // pred_check_branch
      %20 = sbr.rel (0) target = $region17
    $region16: #{tpu_custom_call.1} parent=1 // pred_region
      _
    $region17: #{tpu_custom_call.1} parent=1 // pred_fallthru
      _
    // Predicated region
    $region18: #{tpu_custom_call.1} parent=1 // pred_check
      _
    $region19: #{tpu_custom_call.1} parent=1 // pred_check_branch
      %22 = sbr.rel (0) target = $region21
    $region20: #{tpu_custom_call.1} parent=1 // pred_region
      _
    $region21: #{tpu_custom_call.1} parent=1 // pred_fallthru
      _
    // Predicated region
    $region22: #{tpu_custom_call.1} parent=1 // pred_check
      _
    $region23: #{tpu_custom_call.1} parent=1 // pred_check_branch
      %24 = sbr.rel (0) target = $region25
    $region24: #{tpu_custom_call.1} parent=1 // pred_region
      _
    $region25: #{tpu_custom_call.1} parent=1 // pred_fallthru
      _
    // Predicated region
    $region26: #{tpu_custom_call.1} parent=1 // pred_check
      _
    $region27: #{tpu_custom_call.1} parent=1 // pred_check_branch
      %26 = sbr.rel (0) target = $region29
    $region28: #{tpu_custom_call.1} parent=1 // pred_region
      _
    $region29: #{tpu_custom_call.1} parent=1 // pred_fallthru
      _
    %v28 = vld [vmem:[%s0] sm:$0xff]
    %v29 = vld [vmem:[%s0 + $0x8] sm:$0xff]
    %v30 = vpack.c.bf16 %v29, %v28
    %v31 = vld [vmem:[%s1] sm:$0xf]
    %v32 = vld [vmem:[%s1 + $0x4] sm:$0xf]
    %v33 = vld [vmem:[%s1 + $0x8] sm:$0xf]
    %v34 = vld [vmem:[%s1 + $0xc] sm:$0xf]
    %v35 = vld [vmem:[%s1 + $0x10] sm:$0xf]
    %v36 = vld [vmem:[%s1 + $0x14] sm:$0xf]
    %v37 = vld [vmem:[%s1 + $0x18] sm:$0xf]
    %v38 = vld [vmem:[%s1 + $0x1c] sm:$0xf]
    %v39 = vld [vmem:[%s1 + $0x20] sm:$0xf]
    %v40 = vld [vmem:[%s1 + $0x24] sm:$0xf]
    %v41 = vld [vmem:[%s1 + $0x28] sm:$0xf]
    %v42 = vld [vmem:[%s1 + $0x2c] sm:$0xf]
    %v43 = vld [vmem:[%s1 + $0x30] sm:$0xf]
    %v44 = vld [vmem:[%s1 + $0x34] sm:$0xf]
    %v45 = vld [vmem:[%s1 + $0x38] sm:$0xf]
    %v46 = vld [vmem:[%s1 + $0x3c] sm:$0xf]
    %v47 = vld [vmem:[%s2] sm:$0x1]
    %v49 = vlaneseq
    %v50 = vshrl.u32 %v49, 7
    %v51 = vsub.s32 0, %v50
    %v52 = vrot.slane %v47, %v51
    %v70 = vunpack.c.l.b16 %v31
    %v71 = vunpack.c.l.b16 %v32
    %v72 = vunpack.c.l.b16 %v33
    %v73 = vunpack.c.l.b16 %v34
    %v74 = vunpack.c.l.b16 %v35
    %v75 = vunpack.c.l.b16 %v36
    %v76 = vunpack.c.l.b16 %v37
    %v77 = vunpack.c.l.b16 %v38
    %v78 = vunpack.c.l.b16 %v39
    %v79 = vunpack.c.l.b16 %v40
    %v80 = vunpack.c.l.b16 %v41
    %v81 = vunpack.c.l.b16 %v42
    %v82 = vunpack.c.l.b16 %v43
    %v83 = vunpack.c.l.b16 %v44
    %v84 = vunpack.c.l.b16 %v45
    %v85 = vunpack.c.l.b16 %v46
    %v86 = vpack.c.b16 %v71, %v70
    %v87 = vpack.c.b16 %v73, %v72
    %v88 = vpack.c.b16 %v75, %v74
    %v89 = vpack.c.b16 %v77, %v76
    %v90 = vpack.c.b16 %v79, %v78
    %v91 = vpack.c.b16 %v81, %v80
    %v92 = vpack.c.b16 %v83, %v82
    %v93 = vpack.c.b16 %v85, %v84
    %102 = vmatprep.subr.bf16.mxu0 0
    %103 = vmatpush1.bf16.msra.mxu0 %v86
    %104 = vmatprep.subr.bf16.mxu0 0
    %105 = vmatpush1.bf16.msra.mxu0 %v87
    %106 = vmatprep.subr.bf16.mxu0 0
    %107 = vmatpush1.bf16.msra.mxu0 %v88
    %108 = vmatprep.subr.bf16.mxu0 0
    %109 = vmatpush1.bf16.msra.mxu0 %v89
    %110 = vmatprep.subr.bf16.mxu0 0
    %111 = vmatpush1.bf16.msra.mxu0 %v90
    %112 = vmatprep.subr.bf16.mxu0 0
    %113 = vmatpush1.bf16.msra.mxu0 %v91
    %114 = vmatprep.subr.bf16.mxu0 0
    %115 = vmatpush1.bf16.msra.mxu0 %v92
    %116 = vmatprep.subr.bf16.mxu0 0
    %117 = vmatpush1.bf16.msra.mxu0 %v93
    %118 = vmatprep.subr.bf16.mxu0 0
    %119 = vmatpush1.bf16.msra.mxu0 0
    %120 = vmatprep.subr.bf16.mxu0 0
    %121 = vmatpush1.bf16.msra.mxu0 0
    %122 = vmatprep.subr.bf16.mxu0 0
    %123 = vmatpush1.bf16.msra.mxu0 0
    %124 = vmatprep.subr.bf16.mxu0 0
    %125 = vmatpush1.bf16.msra.mxu0 0
    %126 = vmatprep.subr.bf16.mxu0 0
    %127 = vmatpush1.bf16.msra.mxu0 0
    %128 = vmatprep.subr.bf16.mxu0 0
    %129 = vmatpush1.bf16.msra.mxu0 0
    %130 = vmatprep.subr.bf16.mxu0 0
    %131 = vmatpush1.bf16.msra.mxu0 0
    %132 = vmatprep.subr.bf16.mxu0 0
    %133 = vmatpush1.bf16.msra.mxu0 0
    %134 = vmatprep.mubr.bf16.mxu0 0
    %135 = vmatmul.mubr.bf16.gmra.mrb[0].mxu0 %v30
    %v136 = vpop.f32.mrb[0].mxu0
    %v137 = vadd.f32 %v52, %v136
    %v138 = vpop.f32.mrb[0].mxu0
    %v139 = vpop.f32.mrb[0].mxu0
    %v140 = vadd.f32 %v52, %v139
    %v141 = vpop.f32.mrb[0].mxu0
    %142 = vdwg.mxu0
    %v143 = vmax.f32 %v137, 0.0
    %v144 = vmax.f32 %v140, 0.0
    %v145 = vld [vmem:[%s3] sm:$0xff]
    %v146 = vld [vmem:[%s3 + $0x8] sm:$0xff]
    %v147 = vld [vmem:[%s3 + $0x10] sm:$0xff]
    %v148 = vld [vmem:[%s3 + $0x18] sm:$0xff]
    %v149 = vld [vmem:[%s3 + $0x20] sm:$0xff]
    %v150 = vld [vmem:[%s3 + $0x28] sm:$0xff]
    %v151 = vld [vmem:[%s3 + $0x30] sm:$0xff]
    %v152 = vld [vmem:[%s3 + $0x38] sm:$0xff]
    %v153 = vld [vmem:[%s3 + $0x40] sm:$0xff]
    %v154 = vld [vmem:[%s3 + $0x48] sm:$0xff]
    %v155 = vld [vmem:[%s3 + $0x50] sm:$0xff]
    %v156 = vld [vmem:[%s3 + $0x58] sm:$0xff]
    %v157 = vld [vmem:[%s3 + $0x60] sm:$0xff]
    %v158 = vld [vmem:[%s3 + $0x68] sm:$0xff]
    %v159 = vld [vmem:[%s3 + $0x70] sm:$0xff]
    %v160 = vld [vmem:[%s3 + $0x78] sm:$0xff]
    %v161 = vld [vmem:[%s4] sm:$0x1]
    %v163 = vlaneseq
    %v164 = vshrl.u32 %v163, 7
    %v165 = vsub.s32 0, %v164
    %v166 = vrot.slane %v161, %v165
    %168 = vmatprep.subr.mxu0 0.0
    %169 = vmatpush1.msra.mxu0 %v145
    %170 = vmatprep.subr.mxu0 0.0
    %171 = vmatpush1.msra.mxu0 %v146
    %172 = vmatprep.subr.mxu0 0.0
    %173 = vmatpush1.msra.mxu0 %v147
    %174 = vmatprep.subr.mxu0 0.0
    %175 = vmatpush1.msra.mxu0 %v148
    %176 = vmatprep.subr.mxu0 0.0
    %177 = vmatpush1.msra.mxu0 %v149
    %178 = vmatprep.subr.mxu0 0.0
    %179 = vmatpush1.msra.mxu0 %v150
    %180 = vmatprep.subr.mxu0 0.0
    %181 = vmatpush1.msra.mxu0 %v151
    %182 = vmatprep.subr.mxu0 0.0
    %183 = vmatpush1.msra.mxu0 %v152
    %184 = vmatprep.subr.mxu0 0.0
    %185 = vmatpush1.msra.mxu0 %v153
    %186 = vmatprep.subr.mxu0 0.0
    %187 = vmatpush1.msra.mxu0 %v154
    %188 = vmatprep.subr.mxu0 0.0
    %189 = vmatpush1.msra.mxu0 %v155
    %190 = vmatprep.subr.mxu0 0.0
    %191 = vmatpush1.msra.mxu0 %v156
    %192 = vmatprep.subr.mxu0 0.0
    %193 = vmatpush1.msra.mxu0 %v157
    %194 = vmatprep.subr.mxu0 0.0
    %195 = vmatpush1.msra.mxu0 %v158
    %196 = vmatprep.subr.mxu0 0.0
    %197 = vmatpush1.msra.mxu0 %v159
    %198 = vmatprep.subr.mxu0 0.0
    %199 = vmatpush1.msra.mxu0 %v160
    %200 = vmatprep.subr.mxu0 0.0
    %201 = vmatpush1.msra.mxu0 0.0
    %202 = vmatprep.subr.mxu0 0.0
    %203 = vmatpush1.msra.mxu0 0.0
    %204 = vmatprep.subr.mxu0 0.0
    %205 = vmatpush1.msra.mxu0 0.0
    %206 = vmatprep.subr.mxu0 0.0
    %207 = vmatpush1.msra.mxu0 0.0
    %208 = vmatprep.subr.mxu0 0.0
    %209 = vmatpush1.msra.mxu0 0.0
    %210 = vmatprep.subr.mxu0 0.0
    %211 = vmatpush1.msra.mxu0 0.0
    %212 = vmatprep.subr.mxu0 0.0
    %213 = vmatpush1.msra.mxu0 0.0
    %214 = vmatprep.subr.mxu0 0.0
    %215 = vmatpush1.msra.mxu0 0.0
    %216 = vmatprep.subr.mxu0 0.0
    %217 = vmatpush1.msra.mxu0 0.0
    %218 = vmatprep.subr.mxu0 0.0
    %219 = vmatpush1.msra.mxu0 0.0
    %220 = vmatprep.subr.mxu0 0.0
    %221 = vmatpush1.msra.mxu0 0.0
    %222 = vmatprep.subr.mxu0 0.0
    %223 = vmatpush1.msra.mxu0 0.0
    %224 = vmatprep.subr.mxu0 0.0
    %225 = vmatpush1.msra.mxu0 0.0
    %226 = vmatprep.subr.mxu0 0.0
    %227 = vmatpush1.msra.mxu0 0.0
    %228 = vmatprep.subr.mxu0 0.0
    %229 = vmatpush1.msra.mxu0 0.0
    %230 = vmatprep.subr.mxu0 0.0
    %231 = vmatpush1.msra.mxu0 0.0
    %232 = vmatprep.mubr.f32.mxu0 0.0
    %233 = vmatmul.mubr.f32.gmra.mrb[0].mxu0 %v143
    %v234 = vpop.f32.mrb[0].mxu0
    %v235 = vadd.f32 %v166, %v234
    %v236 = vpop.f32.mrb[0].mxu0
    %237 = vmatprep.mubr.f32.mxu0 0.0
    %238 = vmatmul.mubr.f32.gmra.mrb[0].mxu0 %v144
    %v239 = vpop.f32.mrb[0].mxu0
    %v240 = vadd.f32 %v166, %v239
    %v241 = vpop.f32.mrb[0].mxu0
    %242 = vdwg.mxu0
    %v243 = vmax.f32 %v235, 0.0
    %v244 = vmax.f32 %v240, 0.0
    %v245 = vld [vmem:[%s5] sm:$0xff]
    %v246 = vld [vmem:[%s5 + $0x8] sm:$0xff]
    %v247 = vld [vmem:[%s5 + $0x10] sm:$0xff]
    %v248 = vld [vmem:[%s5 + $0x18] sm:$0xff]
    %v249 = vld [vmem:[%s5 + $0x20] sm:$0xff]
    %v250 = vld [vmem:[%s5 + $0x28] sm:$0xff]
    %v251 = vld [vmem:[%s5 + $0x30] sm:$0xff]
    %v252 = vld [vmem:[%s5 + $0x38] sm:$0xff]
    %v253 = vld [vmem:[%s6] sm:$0x1]
    %v255 = vlaneseq
    %v256 = vshrl.u32 %v255, 7
    %v257 = vsub.s32 0, %v256
    %v258 = vrot.slane %v253, %v257
    %vm260 = vcmask 523264
    %v262 = vsel %vm260, %v243, 0
    %v265 = vsel %vm260, %v244, 0
    %267 = vmatprep.subr.mxu0 0.0
    %268 = vmatpush1.msra.mxu0 %v245
    %269 = vmatprep.subr.mxu0 0.0
    %270 = vmatpush1.msra.mxu0 %v246
    %271 = vmatprep.subr.mxu0 0.0
    %272 = vmatpush1.msra.mxu0 %v247
    %273 = vmatprep.subr.mxu0 0.0
    %274 = vmatpush1.msra.mxu0 %v248
    %275 = vmatprep.subr.mxu0 0.0
    %276 = vmatpush1.msra.mxu0 %v249
    %277 = vmatprep.subr.mxu0 0.0
    %278 = vmatpush1.msra.mxu0 %v250
    %279 = vmatprep.subr.mxu0 0.0
    %280 = vmatpush1.msra.mxu0 %v251
    %281 = vmatprep.subr.mxu0 0.0
    %282 = vmatpush1.msra.mxu0 %v252
    %283 = vmatprep.subr.mxu0 0.0
    %284 = vmatpush1.msra.mxu0 0.0
    %285 = vmatprep.subr.mxu0 0.0
    %286 = vmatpush1.msra.mxu0 0.0
    %287 = vmatprep.subr.mxu0 0.0
    %288 = vmatpush1.msra.mxu0 0.0
    %289 = vmatprep.subr.mxu0 0.0
    %290 = vmatpush1.msra.mxu0 0.0
    %291 = vmatprep.subr.mxu0 0.0
    %292 = vmatpush1.msra.mxu0 0.0
    %293 = vmatprep.subr.mxu0 0.0
    %294 = vmatpush1.msra.mxu0 0.0
    %295 = vmatprep.subr.mxu0 0.0
    %296 = vmatpush1.msra.mxu0 0.0
    %297 = vmatprep.subr.mxu0 0.0
    %298 = vmatpush1.msra.mxu0 0.0
    %299 = vmatprep.subr.mxu0 0.0
    %300 = vmatpush1.msra.mxu0 0.0
    %301 = vmatprep.subr.mxu0 0.0
    %302 = vmatpush1.msra.mxu0 0.0
    %303 = vmatprep.subr.mxu0 0.0
    %304 = vmatpush1.msra.mxu0 0.0
    %305 = vmatprep.subr.mxu0 0.0
    %306 = vmatpush1.msra.mxu0 0.0
    %307 = vmatprep.subr.mxu0 0.0
    %308 = vmatpush1.msra.mxu0 0.0
    %309 = vmatprep.subr.mxu0 0.0
    %310 = vmatpush1.msra.mxu0 0.0
    %311 = vmatprep.subr.mxu0 0.0
    %312 = vmatpush1.msra.mxu0 0.0
    %313 = vmatprep.subr.mxu0 0.0
    %314 = vmatpush1.msra.mxu0 0.0
    %315 = vmatprep.subr.mxu0 0.0
    %316 = vmatpush1.msra.mxu0 0.0
    %317 = vmatprep.subr.mxu0 0.0
    %318 = vmatpush1.msra.mxu0 0.0
    %319 = vmatprep.subr.mxu0 0.0
    %320 = vmatpush1.msra.mxu0 0.0
    %321 = vmatprep.subr.mxu0 0.0
    %322 = vmatpush1.msra.mxu0 0.0
    %323 = vmatprep.subr.mxu0 0.0
    %324 = vmatpush1.msra.mxu0 0.0
    %325 = vmatprep.subr.mxu0 0.0
    %326 = vmatpush1.msra.mxu0 0.0
    %327 = vmatprep.subr.mxu0 0.0
    %328 = vmatpush1.msra.mxu0 0.0
    %329 = vmatprep.subr.mxu0 0.0
    %330 = vmatpush1.msra.mxu0 0.0
    %331 = vmatprep.mubr.f32.mxu0 0.0
    %332 = vmatmul.mubr.f32.gmra.mrb[0].mxu0 %v262
    %v333 = vpop.f32.mrb[0].mxu0
    %v334 = vadd.f32 %v258, %v333
    %v335 = vpop.f32.mrb[0].mxu0
    %336 = vmatprep.mubr.f32.mxu0 0.0
    %337 = vmatmul.mubr.f32.gmra.mrb[0].mxu0 %v265
    %v338 = vpop.f32.mrb[0].mxu0
    %v339 = vadd.f32 %v258, %v338
    %v340 = vpop.f32.mrb[0].mxu0
    %341 = vdwg.mxu0
    %vm342 = vcmask 64512
    %343 = vst.msk [vmem:[#allocation2] sm:$0xff] %vm342, %v334
    %344 = vst.msk [vmem:[#allocation2 + $0x8] sm:$0xff] %vm342, %v339
    // Predicated region
    $region30: #{tpu_custom_call.1} parent=1 // pred_check
      _
    $region31: #{tpu_custom_call.1} parent=1 // pred_check_branch
      %346 = sbr.rel (0) target = $region33
    $region32: #{tpu_custom_call.1} parent=1 // pred_region
      %s348 = ssub.s32 256, 128
      %349 = vsyncadd [#allocation3], %s348
      %s350 = sshll.u32 [#allocation2], 4
      %s351 = int_to_ptr.vmem [resolvable:$true] %s350
      %356 = dma.vmem_to_hbm [thread:$0]  %s351, 128, %s7, [#allocation3], 128, 128, 8
    $region33: #{tpu_custom_call.1} parent=1 // pred_fallthru
      _
    // Predicated region
    $region34: #{tpu_custom_call.1} parent=1 // pred_check
      _
    $region35: #{tpu_custom_call.1} parent=1 // pred_check_branch
      %358 = sbr.rel (0) target = $region37
    $region36: #{tpu_custom_call.1} parent=1 // pred_region
      %359 = dma.done [#allocation3], 256
    $region37: #{tpu_custom_call.1} parent=1 // pred_fallthru
      _
    %360 = vsyncpa [#allocation3], 1

</llo_original>
